<compile_context>
chip_gen: v5e
topology: v5e:2x2
jax: 0.10.0
libtpu: 0.0.40
codegen_flags: <defaults>
</compile_context>

<pallas_src>
import jax
import jax.numpy as jnp
from jax.experimental import pallas as pl
from jax.experimental.pallas import tpu as pltpu


def _rnn_step_kernel(tok_ref,                     # SMEM (1,) int32 (scalar prefetch)
                     emb_hbm,                     # (V, H) embedding table, stays in HBM
                     h_ref,                       # (1, H) f32 hidden state
                     wi_ref, wh_ref,              # (H, 3H) packed W_ih^T / W_hh^T (gate order r|z|n)
                     b_ref,                       # (2, 3H) f32 biases: row0 = b_ih, row1 = b_hh
                     wdec_ref, bdec_ref,          # (H, O), (1, O)
                     out_ref, hnew_ref,           # (1, O), (1, H) outputs
                     xbuf, dma_sem):              # scratch: (1, H) VMEM row buffer + DMA sem
    f32 = jnp.float32
    H = h_ref.shape[-1]
    wdt = wi_ref.dtype                            # weight storage dtype (f32 or bf16)

    # Gather only the selected embedding row HBM -> VMEM (table never fully copied).
    tok = tok_ref[0]
    row_cp = pltpu.make_async_copy(emb_hbm.at[pl.ds(tok, 1), :], xbuf, dma_sem)
    row_cp.start()
    row_cp.wait()

    x = xbuf[...].astype(wdt)                     # (1, H) embedding row
    h = h_ref[...]                                # (1, H) f32

    # Two fused gate matmuls on the MXU (f32 accumulation), gate math in f32.
    #   gi = x W_ih^T + b_ih ; gh = h W_hh^T + b_hh   (PyTorch GRU, gate order r, z, n)
    gi = jnp.dot(x, wi_ref[...], preferred_element_type=f32) + b_ref[0:1, :]
    gh = jnp.dot(h.astype(wdt), wh_ref[...], preferred_element_type=f32) + b_ref[1:2, :]

    r = jax.nn.sigmoid(gi[:, 0:H] + gh[:, 0:H])
    z = jax.nn.sigmoid(gi[:, H:2 * H] + gh[:, H:2 * H])
    n = jnp.tanh(gi[:, 2 * H:3 * H] + r * gh[:, 2 * H:3 * H])
    h_new = (1.0 - z) * n + z * h                 # (1, H) f32

    # Decoder: Linear(H -> O)
    out = jnp.dot(h_new.astype(wdt), wdec_ref[...], preferred_element_type=f32) + bdec_ref[...]

    out_ref[...] = out.astype(out_ref.dtype)
    hnew_ref[...] = h_new.astype(hnew_ref.dtype)


def pack_params(params, weight_dtype=jnp.float32):
    """One-time packing of PyTorch-layout GRU params (call once, outside the step)."""
    emb, w_ih, w_hh = params["emb"], params["w_ih"], params["w_hh"]
    b_ih, b_hh, w_dec, b_dec = params["b_ih"], params["b_hh"], params["w_dec"], params["b_dec"]
    O = w_dec.shape[0]
    return {
        "emb":   emb.astype(weight_dtype),                        # (V, H)   HBM-resident in kernel
        "w_i":   jnp.transpose(w_ih).astype(weight_dtype),        # (H, 3H)  columns r|z|n
        "w_h":   jnp.transpose(w_hh).astype(weight_dtype),        # (H, 3H)
        "b":     jnp.stack([b_ih, b_hh]).astype(jnp.float32),     # (2, 3H)  biases kept f32
        "w_dec": jnp.transpose(w_dec).astype(weight_dtype),       # (H, O)
        "b_dec": b_dec.reshape(1, O).astype(jnp.float32),         # (1, O)
    }


def rnn_forward(x, hidden, packed):
    """Mirrors RNN.forward(x, hidden) -> (out, hidden) using pre-packed params."""
    emb = packed["emb"]
    V, H = emb.shape
    H3 = 3 * H
    O = packed["w_dec"].shape[1]

    # Single-token step; clamp so the in-kernel row DMA is always in bounds.
    tok = jnp.clip(jnp.asarray(x, jnp.int32).reshape(-1)[:1], 0, V - 1)      # (1,)
    h0 = jnp.asarray(hidden, jnp.float32).reshape(1, H)

    const = lambda i, tok_ref: (0, 0)
    grid_spec = pltpu.PrefetchScalarGridSpec(
        num_scalar_prefetch=1,
        grid=(1,),
        in_specs=[
            pl.BlockSpec(memory_space=pl.ANY),     # embedding table: stays in HBM
            pl.BlockSpec((1, H), const),           # hidden state
            pl.BlockSpec((H, H3), const),          # W_ih^T packed
            pl.BlockSpec((H, H3), const),          # W_hh^T packed
            pl.BlockSpec((2, H3), const),          # packed biases
            pl.BlockSpec((H, O), const),           # W_dec^T
            pl.BlockSpec((1, O), const),           # b_dec
        ],
        out_specs=(
            pl.BlockSpec((1, O), const),
            pl.BlockSpec((1, H), const),
        ),
        scratch_shapes=[
            pltpu.VMEM((1, H), emb.dtype),         # gathered embedding row
            pltpu.SemaphoreType.DMA(()),
        ],
    )

    out, h_new = pl.pallas_call(
        _rnn_step_kernel,
        grid_spec=grid_spec,
        out_shape=(
            jax.ShapeDtypeStruct((1, O), jnp.float32),
            jax.ShapeDtypeStruct((1, H), jnp.float32),
        ),
        compiler_params=pltpu.CompilerParams(
            dimension_semantics=("arbitrary",)),
    )(tok, emb, h0,
      packed["w_i"], packed["w_h"], packed["b"],
      packed["w_dec"], packed["b_dec"])

    return out, h_new.reshape(1, 1, H)


def _rnn_forward_ref(x, hidden, params):
    """Pure-JAX f32 reference (same math as PyTorch GRU single step)."""
    emb, w_ih, w_hh = params["emb"], params["w_ih"], params["w_hh"]
    b_ih, b_hh, w_dec, b_dec = params["b_ih"], params["b_hh"], params["w_dec"], params["b_dec"]
    H = emb.shape[1]
    tok = jnp.asarray(x, jnp.int32).reshape(-1)[0]
    h = jnp.asarray(hidden, jnp.float32).reshape(1, H)
    xe = emb[tok][None, :]
    gi = xe @ w_ih.T + b_ih
    gh = h @ w_hh.T + b_hh
    r = jax.nn.sigmoid(gi[:, :H] + gh[:, :H])
    z = jax.nn.sigmoid(gi[:, H:2 * H] + gh[:, H:2 * H])
    n = jnp.tanh(gi[:, 2 * H:] + r * gh[:, 2 * H:])
    h_new = (1.0 - z) * n + z * h
    out = h_new @ w_dec.T + b_dec
    return out, h_new.reshape(1, 1, H)


def _rnn_forward_ref_packed(x, hidden, packed):
    """Pure-JAX reference using the (possibly bf16) packed weights, math in f32."""
    emb = packed["emb"].astype(jnp.float32)
    w_i = packed["w_i"].astype(jnp.float32)
    w_h = packed["w_h"].astype(jnp.float32)
    w_dec = packed["w_dec"].astype(jnp.float32)
    b, b_dec = packed["b"], packed["b_dec"]
    V, H = emb.shape
    tok = jnp.clip(jnp.asarray(x, jnp.int32).reshape(-1)[0], 0, V - 1)
    h = jnp.asarray(hidden, jnp.float32).reshape(1, H)
    xe = emb[tok][None, :]
    gi = xe @ w_i + b[0:1]
    gh = h @ w_h + b[1:2]
    r = jax.nn.sigmoid(gi[:, :H] + gh[:, :H])
    z = jax.nn.sigmoid(gi[:, H:2 * H] + gh[:, H:2 * H])
    n = jnp.tanh(gi[:, 2 * H:] + r * gh[:, 2 * H:])
    h_new = (1.0 - z) * n + z * h
    out = h_new @ w_dec + b_dec
    return out, h_new.reshape(1, 1, H)


def init_params(key, input_size, hidden_size, output_size):
    H, V, O = hidden_size, input_size, output_size
    ks = jax.random.split(key, 7)
    s = 1.0 / jnp.sqrt(H)
    return {
        "emb":   jax.random.normal(ks[0], (V, H), jnp.float32),
        "w_ih":  jax.random.uniform(ks[1], (3 * H, H), jnp.float32, -s, s),
        "w_hh":  jax.random.uniform(ks[2], (3 * H, H), jnp.float32, -s, s),
        "b_ih":  jax.random.uniform(ks[3], (3 * H,), jnp.float32, -s, s),
        "b_hh":  jax.random.uniform(ks[4], (3 * H,), jnp.float32, -s, s),
        "w_dec": jax.random.uniform(ks[5], (O, H), jnp.float32, -s, s),
        "b_dec": jax.random.uniform(ks[6], (O,), jnp.float32, -s, s),
    }


if __name__ == "__main__":
    input_size = 64    # vocab
    hidden_size = 32
    output_size = 64

    key = jax.random.PRNGKey(0)
    pkey, xkey = jax.random.split(key)
    params = init_params(pkey, input_size, hidden_size, output_size)

    x = jax.random.randint(xkey, (1,), 0, input_size, jnp.int32)   # single token
    hidden = jnp.zeros((1, 1, hidden_size), jnp.float32)           # init_hidden()

    step = jax.jit(rnn_forward)

    # 1) f32-stored weights: exact original-module semantics.
    packed_f32 = pack_params(params, jnp.float32)
    out, h_new = jax.block_until_ready(step(x, hidden, packed_f32))
    out_ref, h_ref = _rnn_forward_ref(x, hidden, params)
    assert out.shape == (1, output_size) and h_new.shape == (1, 1, hidden_size)
    assert jnp.allclose(out, out_ref, rtol=1e-3, atol=1e-3)
    assert jnp.allclose(h_new, h_ref, rtol=1e-3, atol=1e-3)

    # 2) bf16-stored weights (recommended on v6e/v7x: halves weight DMA bytes; f32
    #    accumulation + f32 gate math). Checked against a matched-precision reference.
    packed_bf16 = pack_params(params, jnp.bfloat16)
    out_b, h_b = jax.block_until_ready(step(x, hidden, packed_bf16))
    out_bref, h_bref = _rnn_forward_ref_packed(x, hidden, packed_bf16)
    assert jnp.allclose(out_b, out_bref, rtol=2e-2, atol=2e-2)
    assert jnp.allclose(h_b, h_bref, rtol=2e-2, atol=2e-2)

    print("KERNEL_OK")
</pallas_src>

<mosaic_0001>
module attributes {stable_mosaic.version = 11 : i64} {
  func.func @_rnn_step_kernel(%arg0: i32, %arg1: memref<1xi32, #tpu.memory_space<smem>>, %arg2: memref<64x32xf32, #tpu.memory_space<any>>, %arg3: memref<1x32xf32, #tpu.memory_space<vmem>>, %arg4: memref<32x96xf32, #tpu.memory_space<vmem>>, %arg5: memref<32x96xf32, #tpu.memory_space<vmem>>, %arg6: memref<2x96xf32, #tpu.memory_space<vmem>>, %arg7: memref<32x64xf32, #tpu.memory_space<vmem>>, %arg8: memref<1x64xf32, #tpu.memory_space<vmem>>, %arg9: memref<1x64xf32, #tpu.memory_space<vmem>>, %arg10: memref<1x32xf32, #tpu.memory_space<vmem>>, %arg11: memref<1x32xf32, #tpu.memory_space<vmem>>, %arg12: memref<!tpu.dma_semaphore, #tpu.memory_space<semaphore_mem>>) attributes {dimension_semantics = [#tpu.dimension_semantics<arbitrary>], iteration_bounds = array<i64: 1>, scalar_prefetch = 1 : i64, scratch_operands = 2 : i64, tpu.core_type = #tpu.core_type<tc>, window_params = [{}, {pipeline_mode = #tpu.pipeline_mode<synchronous>, transform_indices = @transform_1, window_bounds = array<i64: 1, 32>}, {pipeline_mode = #tpu.pipeline_mode<synchronous>, transform_indices = @transform_2, window_bounds = array<i64: 32, 96>}, {pipeline_mode = #tpu.pipeline_mode<synchronous>, transform_indices = @transform_3, window_bounds = array<i64: 32, 96>}, {pipeline_mode = #tpu.pipeline_mode<synchronous>, transform_indices = @transform_4, window_bounds = array<i64: 2, 96>}, {pipeline_mode = #tpu.pipeline_mode<synchronous>, transform_indices = @transform_5, window_bounds = array<i64: 32, 64>}, {pipeline_mode = #tpu.pipeline_mode<synchronous>, transform_indices = @transform_6, window_bounds = array<i64: 1, 64>}, {pipeline_mode = #tpu.pipeline_mode<synchronous>, transform_indices = @transform_7, window_bounds = array<i64: 1, 64>}, {pipeline_mode = #tpu.pipeline_mode<synchronous>, transform_indices = @transform_8, window_bounds = array<i64: 1, 32>}]} {
    %c0 = arith.constant 0 : index
    %0 = memref.load %arg1[%c0] : memref<1xi32, #tpu.memory_space<smem>>
    %c0_i32 = arith.constant 0 : i32
    %1 = tpu.memref_slice %arg2[%0, %c0_i32] : memref<64x32xf32, #tpu.memory_space<any>> -> memref<1x32xf32, #tpu.memory_space<any>>
    tpu.enqueue_dma source(%1 : memref<1x32xf32, #tpu.memory_space<any>>) target(%arg11 : memref<1x32xf32, #tpu.memory_space<vmem>>) target_semaphore(%arg12 : memref<!tpu.dma_semaphore, #tpu.memory_space<semaphore_mem>>)
    %c0_i32_0 = arith.constant 0 : i32
    %2 = tpu.memref_slice %arg2[%0, %c0_i32_0] : memref<64x32xf32, #tpu.memory_space<any>> -> memref<1x32xf32, #tpu.memory_space<any>>
    tpu.wait_dma2 semaphore(%arg12 : memref<!tpu.dma_semaphore, #tpu.memory_space<semaphore_mem>>) src(%2 : memref<1x32xf32, #tpu.memory_space<any>>) dst(%arg11 : memref<1x32xf32, #tpu.memory_space<vmem>>)
    %c0_1 = arith.constant 0 : index
    %c0_2 = arith.constant 0 : index
    %3 = vector.load %arg11[%c0_1, %c0_2] : memref<1x32xf32, #tpu.memory_space<vmem>>, vector<1x32xf32>
    %c0_3 = arith.constant 0 : index
    %c0_4 = arith.constant 0 : index
    %4 = vector.load %arg3[%c0_3, %c0_4] : memref<1x32xf32, #tpu.memory_space<vmem>>, vector<1x32xf32>
    %c0_5 = arith.constant 0 : index
    %c0_6 = arith.constant 0 : index
    %5 = vector.load %arg4[%c0_5, %c0_6] : memref<32x96xf32, #tpu.memory_space<vmem>>, vector<32x96xf32>
    %cst = arith.constant dense<0.000000e+00> : vector<1x96xf32>
    %6 = tpu.matmul %3, %5, %cst {dimension_numbers = #tpu.dot_dimension_numbers<[1], [0], [0], [1], [0, 0, 1, 1], [], []>} : vector<1x32xf32>, vector<32x96xf32>, vector<1x96xf32> -> vector<1x96xf32>
    %c0_7 = arith.constant 0 : index
    %c0_8 = arith.constant 0 : index
    %7 = vector.load %arg6[%c0_7, %c0_8] : memref<2x96xf32, #tpu.memory_space<vmem>>, vector<1x96xf32>
    %8 = arith.addf %6, %7 : vector<1x96xf32>
    %c0_9 = arith.constant 0 : index
    %c0_10 = arith.constant 0 : index
    %9 = vector.load %arg5[%c0_9, %c0_10] : memref<32x96xf32, #tpu.memory_space<vmem>>, vector<32x96xf32>
    %cst_11 = arith.constant dense<0.000000e+00> : vector<1x96xf32>
    %10 = tpu.matmul %4, %9, %cst_11 {dimension_numbers = #tpu.dot_dimension_numbers<[1], [0], [0], [1], [0, 0, 1, 1], [], []>} : vector<1x32xf32>, vector<32x96xf32>, vector<1x96xf32> -> vector<1x96xf32>
    %c1 = arith.constant 1 : index
    %c0_12 = arith.constant 0 : index
    %11 = vector.load %arg6[%c1, %c0_12] : memref<2x96xf32, #tpu.memory_space<vmem>>, vector<1x96xf32>
    %12 = arith.addf %10, %11 : vector<1x96xf32>
    %13 = vector.extract_strided_slice %8 {offsets = [0, 0], sizes = [1, 32], strides = [1, 1]} : vector<1x96xf32> to vector<1x32xf32>
    %14 = vector.extract_strided_slice %12 {offsets = [0, 0], sizes = [1, 32], strides = [1, 1]} : vector<1x96xf32> to vector<1x32xf32>
    %15 = arith.addf %13, %14 : vector<1x32xf32>
    %16 = arith.negf %15 : vector<1x32xf32>
    %17 = math.exp %16 : vector<1x32xf32>
    %cst_13 = arith.constant 1.000000e+00 : f32
    %18 = vector.broadcast %cst_13 : f32 to vector<1x32xf32>
    %19 = arith.addf %18, %17 : vector<1x32xf32>
    %20 = arith.divf %18, %19 : vector<1x32xf32>
    %21 = vector.extract_strided_slice %8 {offsets = [0, 32], sizes = [1, 32], strides = [1, 1]} : vector<1x96xf32> to vector<1x32xf32>
    %22 = vector.extract_strided_slice %12 {offsets = [0, 32], sizes = [1, 32], strides = [1, 1]} : vector<1x96xf32> to vector<1x32xf32>
    %23 = arith.addf %21, %22 : vector<1x32xf32>
    %24 = arith.negf %23 : vector<1x32xf32>
    %25 = math.exp %24 : vector<1x32xf32>
    %cst_14 = arith.constant 1.000000e+00 : f32
    %26 = vector.broadcast %cst_14 : f32 to vector<1x32xf32>
    %27 = arith.addf %26, %25 : vector<1x32xf32>
    %28 = arith.divf %26, %27 : vector<1x32xf32>
    %29 = vector.extract_strided_slice %8 {offsets = [0, 64], sizes = [1, 32], strides = [1, 1]} : vector<1x96xf32> to vector<1x32xf32>
    %30 = vector.extract_strided_slice %12 {offsets = [0, 64], sizes = [1, 32], strides = [1, 1]} : vector<1x96xf32> to vector<1x32xf32>
    %31 = arith.mulf %20, %30 : vector<1x32xf32>
    %32 = arith.addf %29, %31 : vector<1x32xf32>
    %33 = math.tanh %32 : vector<1x32xf32>
    %cst_15 = arith.constant 1.000000e+00 : f32
    %34 = vector.broadcast %cst_15 : f32 to vector<1x32xf32>
    %35 = arith.subf %34, %28 : vector<1x32xf32>
    %36 = arith.mulf %35, %33 : vector<1x32xf32>
    %37 = arith.mulf %28, %4 : vector<1x32xf32>
    %38 = arith.addf %36, %37 : vector<1x32xf32>
    %c0_16 = arith.constant 0 : index
    %c0_17 = arith.constant 0 : index
    %39 = vector.load %arg7[%c0_16, %c0_17] : memref<32x64xf32, #tpu.memory_space<vmem>>, vector<32x64xf32>
    %cst_18 = arith.constant dense<0.000000e+00> : vector<1x64xf32>
    %40 = tpu.matmul %38, %39, %cst_18 {dimension_numbers = #tpu.dot_dimension_numbers<[1], [0], [0], [1], [0, 0, 1, 1], [], []>} : vector<1x32xf32>, vector<32x64xf32>, vector<1x64xf32> -> vector<1x64xf32>
    %c0_19 = arith.constant 0 : index
    %c0_20 = arith.constant 0 : index
    %41 = vector.load %arg8[%c0_19, %c0_20] : memref<1x64xf32, #tpu.memory_space<vmem>>, vector<1x64xf32>
    %42 = arith.addf %40, %41 : vector<1x64xf32>
    %c0_21 = arith.constant 0 : index
    %c0_22 = arith.constant 0 : index
    %43 = vector.load %arg9[%c0_21, %c0_22] : memref<1x64xf32, #tpu.memory_space<vmem>>, vector<1x64xf32>
    tpu.vector_store %arg9[%c0_21, %c0_22], %42 {strides = array<i32>} : memref<1x64xf32, #tpu.memory_space<vmem>>, vector<1x64xf32>,
    %c0_23 = arith.constant 0 : index
    %c0_24 = arith.constant 0 : index
    %44 = vector.load %arg10[%c0_23, %c0_24] : memref<1x32xf32, #tpu.memory_space<vmem>>, vector<1x32xf32>
    tpu.vector_store %arg10[%c0_23, %c0_24], %38 {strides = array<i32>} : memref<1x32xf32, #tpu.memory_space<vmem>>, vector<1x32xf32>,
    return
  }
  func.func @transform_1(%arg0: i32, %arg1: memref<1xi32, #tpu.memory_space<smem>>) -> (i32, i32) {
    %c0_i32 = arith.constant 0 : i32
    %c0_i32_0 = arith.constant 0 : i32
    %c0_i32_1 = arith.constant 0 : i32
    return %c0_i32, %c0_i32_0 : i32, i32
  }
  func.func @transform_2(%arg0: i32, %arg1: memref<1xi32, #tpu.memory_space<smem>>) -> (i32, i32) {
    %c0_i32 = arith.constant 0 : i32
    %c0_i32_0 = arith.constant 0 : i32
    %c0_i32_1 = arith.constant 0 : i32
    return %c0_i32, %c0_i32_0 : i32, i32
  }
  func.func @transform_3(%arg0: i32, %arg1: memref<1xi32, #tpu.memory_space<smem>>) -> (i32, i32) {
    %c0_i32 = arith.constant 0 : i32
    %c0_i32_0 = arith.constant 0 : i32
    %c0_i32_1 = arith.constant 0 : i32
    return %c0_i32, %c0_i32_0 : i32, i32
  }
  func.func @transform_4(%arg0: i32, %arg1: memref<1xi32, #tpu.memory_space<smem>>) -> (i32, i32) {
    %c0_i32 = arith.constant 0 : i32
    %c0_i32_0 = arith.constant 0 : i32
    %c0_i32_1 = arith.constant 0 : i32
    return %c0_i32, %c0_i32_0 : i32, i32
  }
  func.func @transform_5(%arg0: i32, %arg1: memref<1xi32, #tpu.memory_space<smem>>) -> (i32, i32) {
    %c0_i32 = arith.constant 0 : i32
    %c0_i32_0 = arith.constant 0 : i32
    %c0_i32_1 = arith.constant 0 : i32
    return %c0_i32, %c0_i32_0 : i32, i32
  }
  func.func @transform_6(%arg0: i32, %arg1: memref<1xi32, #tpu.memory_space<smem>>) -> (i32, i32) {
    %c0_i32 = arith.constant 0 : i32
    %c0_i32_0 = arith.constant 0 : i32
    %c0_i32_1 = arith.constant 0 : i32
    return %c0_i32, %c0_i32_0 : i32, i32
  }
  func.func @transform_7(%arg0: i32, %arg1: memref<1xi32, #tpu.memory_space<smem>>) -> (i32, i32) {
    %c0_i32 = arith.constant 0 : i32
    %c0_i32_0 = arith.constant 0 : i32
    %c0_i32_1 = arith.constant 0 : i32
    return %c0_i32, %c0_i32_0 : i32, i32
  }
  func.func @transform_8(%arg0: i32, %arg1: memref<1xi32, #tpu.memory_space<smem>>) -> (i32, i32) {
    %c0_i32 = arith.constant 0 : i32
    %c0_i32_0 = arith.constant 0 : i32
    %c0_i32_1 = arith.constant 0 : i32
    return %c0_i32, %c0_i32_0 : i32, i32
  }
}

</mosaic_0001>

<llo_original>
// kernel: rnn_forward.1
$region0: #{rnn_forward.1}
  #allocation0 [shape = 'u32[]', space=smem, size = 0x4, offset = 0x4, fixed_abs, tag = 'smem constant byte address 0x4 - core index']
  #allocation1 [shape = 'u32[72,128]{1,0:T(1,128)}', space=vmem, size = 0x9000, scoped, tag = 'internal scratch']
  #allocation2 [shape = 'f32[1,32]{1,0:T(1,128)}', space=vmem, size = 0x200, scoped, tag = 'scratch operand']
  #allocation3 [shape = 's32[1]{0}', space=sflag, size = 0x4, scoped, tag = 'scratch operand']
  #allocation4 [shape = 's32[1]{0}', space=sflag, size = 0x4, scoped, tag = 'scoped memory for rnn_forward.1']
  #allocation5 [shape = 's32[1]{0:T(128)S(6)}', space=smem, size = 0x200, scoped, tag = 'prefetched SMEM operand 0']
  #allocation10 [shape = 's32[]', space=sflag, size = 0x4, offset = 0, fixed_abs, tag = 'sflag constant byte address 0x0 - dummy sync flag']
  %s0 = inlined_call_operand.<no memory space> [shape: s32[1], index: 0, kind: input, shape index: {}]
  %s1 = inlined_call_operand.vmem [shape: f32[64,32], index: 1, kind: input, shape index: {}]
  %s2 = inlined_call_operand.vmem [shape: f32[1,32], index: 2, kind: input, shape index: {}]
  %s3 = inlined_call_operand.vmem [shape: f32[32,96], index: 3, kind: input, shape index: {}]
  %s4 = inlined_call_operand.vmem [shape: f32[32,96], index: 4, kind: input, shape index: {}]
  %s5 = inlined_call_operand.vmem [shape: f32[2,96], index: 5, kind: input, shape index: {}]
  %s6 = inlined_call_operand.vmem [shape: f32[32,64], index: 6, kind: input, shape index: {}]
  %s7 = inlined_call_operand.vmem [shape: f32[1,64], index: 7, kind: input, shape index: {}]
  %s8 = inlined_call_operand.hbm [shape: f32[1,64], index: 8, kind: output, shape index: {0}]
  %s9 = inlined_call_operand.hbm [shape: f32[1,32], index: 9, kind: output, shape index: {1}]
  %10 = xla_tuple %s8, %s9
  %s11 = sld [smem:[#allocation0]]
  $region72: #{rnn_forward.1} parent=0
    _
  %s13 = ssub.s32 1, %s11
  %s14 = scalar_select 0, %s13, %s11
  %15 = sst [smem:[#allocation5]] %s0
  $region1: #{rnn_forward.1} parent=0
    #allocation6 [shape = 'u8[512]{0}', space=vmem, size = 0x400, scoped, tag = 'output window, operand 0, single buffered']
    #allocation7 [shape = 's32[1]{0}', space=sflag, size = 0x4, scoped, tag = 'scoped memory for rnn_forward.1']
    #allocation8 [shape = 'u8[512]{0}', space=vmem, size = 0x400, scoped, tag = 'output window, operand 1, single buffered']
    #allocation9 [shape = 's32[1]{0}', space=sflag, size = 0x4, scoped, tag = 'scoped memory for rnn_forward.1']
    %16 = vsyncpa [#allocation7], 0
    %17 = vsyncpa [#allocation9], 0
    // Predicated region
    $region2: #{rnn_forward.1} parent=1 // pred_check
      _
    $region3: #{rnn_forward.1} parent=1 // pred_check_branch
      %19 = sbr.rel (0) target = $region5
    $region4: #{rnn_forward.1} parent=1 // pred_region
      _
    $region5: #{rnn_forward.1} parent=1 // pred_fallthru
      _
    // Predicated region
    $region6: #{rnn_forward.1} parent=1 // pred_check
      _
    $region7: #{rnn_forward.1} parent=1 // pred_check_branch
      %21 = sbr.rel (0) target = $region9
    $region8: #{rnn_forward.1} parent=1 // pred_region
      _
    $region9: #{rnn_forward.1} parent=1 // pred_fallthru
      _
    // Predicated region
    $region10: #{rnn_forward.1} parent=1 // pred_check
      _
    $region11: #{rnn_forward.1} parent=1 // pred_check_branch
      %23 = sbr.rel (0) target = $region13
    $region12: #{rnn_forward.1} parent=1 // pred_region
      _
    $region13: #{rnn_forward.1} parent=1 // pred_fallthru
      _
    // Predicated region
    $region14: #{rnn_forward.1} parent=1 // pred_check
      _
    $region15: #{rnn_forward.1} parent=1 // pred_check_branch
      %25 = sbr.rel (0) target = $region17
    $region16: #{rnn_forward.1} parent=1 // pred_region
      _
    $region17: #{rnn_forward.1} parent=1 // pred_fallthru
      _
    // Predicated region
    $region18: #{rnn_forward.1} parent=1 // pred_check
      _
    $region19: #{rnn_forward.1} parent=1 // pred_check_branch
      %27 = sbr.rel (0) target = $region21
    $region20: #{rnn_forward.1} parent=1 // pred_region
      _
    $region21: #{rnn_forward.1} parent=1 // pred_fallthru
      _
    // Predicated region
    $region22: #{rnn_forward.1} parent=1 // pred_check
      _
    $region23: #{rnn_forward.1} parent=1 // pred_check_branch
      %29 = sbr.rel (0) target = $region25
    $region24: #{rnn_forward.1} parent=1 // pred_region
      _
    $region25: #{rnn_forward.1} parent=1 // pred_fallthru
      _
    %s30 = sld [smem:[#allocation5]]
    %s31 = scalar_lea.vmem %s1, %s30
    // Predicated region
    $region26: #{rnn_forward.1} parent=1 // pred_check
      _
    $region27: #{rnn_forward.1} parent=1 // pred_check_branch
      %33 = sbr.rel target = $region29
    $region28: #{rnn_forward.1} parent=1 // pred_region
      // Predicated region
      $region41: #{rnn_forward.1} parent=28 // pred_check
        _
      $region42: #{rnn_forward.1} parent=28 // pred_check_branch
        %49 = sbr.rel (0) target = $region44
      $region43: #{rnn_forward.1} parent=28 // pred_region
        %s51 = ssub.s32 2, 1
        loop: start=0, step=1, limit=1
        $region45: #{rnn_forward.1} parent=43 // loop_pre_header
          _
        $region46: #{rnn_forward.1} parent=43 // loop_header
          %s53 = sphi 0, %s57
          %p54 = scmp.ge.s32.totalorder %s53, 1
          %s58 = sphi %s31, %s31
          %s59 = sphi [#allocation2], [#allocation2]
        $region47: #{rnn_forward.1} parent=43 // loop_header_branch
          %56 = sbr.rel (%p54) target = $region51
        $region48: #{rnn_forward.1} parent=43 // loop_body
          %v60 = vld [vmem:[%s58] sm:%s51]
          %61 = vst [vmem:[%s59] sm:%s51] %v60
        $region49: #{rnn_forward.1} parent=43 // loop_footer
          %s57 = sadd.s32 1, %s53
        $region50: #{rnn_forward.1} parent=43 // loop_footer_branch
          %52 = sbr.rel target = $region46
        $region51: #{rnn_forward.1} parent=43 // loop_exit
          _
      $region44: #{rnn_forward.1} parent=28 // pred_fallthru
        _
    $region29: #{rnn_forward.1} parent=1 // pred_fallthru
      _
    // Predicated region
    $region30: #{rnn_forward.1} parent=1 // pred_check
      _
    $region31: #{rnn_forward.1} parent=1 // pred_check_branch
      %35 = sbr.rel (0) target = $region33
    $region32: #{rnn_forward.1} parent=1 // pred_region
      %s37 = ssub.s32 2, 1
      loop: start=0, step=1, limit=1
      $region34: #{rnn_forward.1} parent=32 // loop_pre_header
        _
      $region35: #{rnn_forward.1} parent=32 // loop_header
        %s39 = sphi 0, %s43
        %p40 = scmp.ge.s32.totalorder %s39, 1
        %s44 = sphi %s31, %s31
        %s45 = sphi [#allocation2], [#allocation2]
      $region36: #{rnn_forward.1} parent=32 // loop_header_branch
        %42 = sbr.rel (%p40) target = $region40
      $region37: #{rnn_forward.1} parent=32 // loop_body
        %v46 = vld [vmem:[%s44] sm:%s37]
        %47 = vst [vmem:[%s45] sm:%s37] %v46
      $region38: #{rnn_forward.1} parent=32 // loop_footer
        %s43 = sadd.s32 1, %s39
      $region39: #{rnn_forward.1} parent=32 // loop_footer_branch
        %38 = sbr.rel target = $region35
      $region40: #{rnn_forward.1} parent=32 // loop_exit
        _
    $region33: #{rnn_forward.1} parent=1 // pred_fallthru
      _
    // Predicated region
    $region52: #{rnn_forward.1} parent=1 // pred_check
      _
    $region53: #{rnn_forward.1} parent=1 // pred_check_branch
      %64 = sbr.rel (0) target = $region55
    $region54: #{rnn_forward.1} parent=1 // pred_region
      %65 = vsyncadd [#allocation3], 16
    $region55: #{rnn_forward.1} parent=1 // pred_fallthru
      _
    %s66 = smul.u32 1, 1
    %s67 = sshll.u32 %s66, 4
    %68 = dma.done [#allocation3], %s67
    %v69 = vld [vmem:[#allocation2] sm:$0x1]
    %v70 = vld [vmem:[%s2] sm:$0x1]
    %v71 = vld [vmem:[%s3] sm:$0xff]
    %v72 = vld [vmem:[%s3 + $0x8] sm:$0xff]
    %v73 = vld [vmem:[%s3 + $0x10] sm:$0xff]
    %v74 = vld [vmem:[%s3 + $0x18] sm:$0xff]
    %v75 = vld [vmem:[%s5] sm:$0x1]
    %vm76 = vcmask 261120
    %v78 = vsel %vm76, %v69, 0
    %80 = vmatpush.msra.mxu0 0.0
    %81 = vmatpush.msra.mxu0 0.0
    %82 = vmatpush.msra.mxu0 0.0
    %83 = vmatpush.msra.mxu0 0.0
    %84 = vmatpush.msra.mxu0 0.0
    %85 = vmatpush.msra.mxu0 0.0
    %86 = vmatpush.msra.mxu0 0.0
    %87 = vmatpush.msra.mxu0 0.0
    %88 = vmatpush.msra.mxu0 0.0
    %89 = vmatpush.msra.mxu0 0.0
    %90 = vmatpush.msra.mxu0 0.0
    %91 = vmatpush.msra.mxu0 0.0
    %92 = vmatpush.msra.mxu0 %v74
    %93 = vmatpush.msra.mxu0 %v73
    %94 = vmatpush.msra.mxu0 %v72
    %95 = vmatpush.msra.mxu0 %v71
    %96 = vmatmul.f32.gmra.mxu0 %v78
    %v97 = vpop.f32.mrf.mxu0
    %v98 = vadd.f32 %v75, %v97
    %99 = vdwg.mxu0
    %v100 = vld [vmem:[%s4] sm:$0xff]
    %v101 = vld [vmem:[%s4 + $0x8] sm:$0xff]
    %v102 = vld [vmem:[%s4 + $0x10] sm:$0xff]
    %v103 = vld [vmem:[%s4 + $0x18] sm:$0xff]
    %v104 = vld [vmem:[%s5 + $0x1] sm:$0x1]
    %v106 = vsel %vm76, %v70, 0
    %108 = vmatpush.msra.mxu0 0.0
    %109 = vmatpush.msra.mxu0 0.0
    %110 = vmatpush.msra.mxu0 0.0
    %111 = vmatpush.msra.mxu0 0.0
    %112 = vmatpush.msra.mxu0 0.0
    %113 = vmatpush.msra.mxu0 0.0
    %114 = vmatpush.msra.mxu0 0.0
    %115 = vmatpush.msra.mxu0 0.0
    %116 = vmatpush.msra.mxu0 0.0
    %117 = vmatpush.msra.mxu0 0.0
    %118 = vmatpush.msra.mxu0 0.0
    %119 = vmatpush.msra.mxu0 0.0
    %120 = vmatpush.msra.mxu0 %v103
    %121 = vmatpush.msra.mxu0 %v102
    %122 = vmatpush.msra.mxu0 %v101
    %123 = vmatpush.msra.mxu0 %v100
    %124 = vmatmul.f32.gmra.mxu0 %v106
    %v125 = vpop.f32.mrf.mxu0
    %v126 = vadd.f32 %v104, %v125
    %127 = vdwg.mxu0
    %v128 = vadd.f32 %v98, %v126
    %v129 = vxor.u32 %v128, 2147483648
    %v130 = vmul.f32 %v129, 1.442695
    %v131 = vpow.pop %v130
    %v132 = vadd.f32 %v131, 1.0
    %v133 = vrcp.pop %v132
    %v134 = vmul.f32 %v132, %v133
    %v135 = vsub.f32 1.0, %v134
    %v136 = vmul.f32 %v133, %v135
    %v137 = vadd.f32 %v133, %v136
    %vm138 = vweird.f32 %v132
    %vm139 = vweird.f32 %v133
    %vm140 = vmor %vm138, %vm139
    %v141 = vsel %vm140, %v133, %v137
    %v142 = vand.u32 2147483647, %v132
    %vm143 = vcmp.eq.f32.partialorder %v142, 8.507059e+37
    %v144 = vand.u32 %v132, 2147483648
    %v145 = vor.u32 1.1754944e-38, %v144
    %v146 = vsel %vm143, %v145, %v141
    %v147 = vmul.f32 1.0, %v146
    %149 = vrot.lane.b32.xlu0 %v126, 64
    %v150 = vpop.permute.xlu0 %149
    %v152 = vmul.f32 %v147, %v150
    %154 = vrot.lane.b32.xlu0 %v152, 64
    %v155 = vpop.permute.xlu0 %154
    %v157 = vadd.f32 %v98, %v155
    %v158 = vtanh.pop %v157
    %v159 = vsub.f32 1.0, %v147
    %161 = vrot.lane.b32.xlu0 %v158, 96
    %v162 = vpop.permute.xlu0 %161
    %v164 = vmul.f32 %v159, %v162
    %v165 = vperm.slane %v70, 0
    %166 = vrot.lane.b32.xlu0 %v165, 32
    %v167 = vpop.permute.xlu0 %166
    %v169 = vmul.f32 %v147, %v167
    %v170 = vadd.f32 %v164, %v169
    %v171 = vld [vmem:[%s6] sm:$0xff]
    %v172 = vld [vmem:[%s6 + $0x8] sm:$0xff]
    %v173 = vld [vmem:[%s6 + $0x10] sm:$0xff]
    %v174 = vld [vmem:[%s6 + $0x18] sm:$0xff]
    %v175 = vld [vmem:[%s7] sm:$0x1]
    %177 = vrot.lane.b32.xlu0 %v170, 96
    %v178 = vpop.permute.xlu0 %177
    %v179 = vsel %vm76, %v178, 0
    %181 = vmatpush.msra.mxu0 0.0
    %182 = vmatpush.msra.mxu0 0.0
    %183 = vmatpush.msra.mxu0 0.0
    %184 = vmatpush.msra.mxu0 0.0
    %185 = vmatpush.msra.mxu0 0.0
    %186 = vmatpush.msra.mxu0 0.0
    %187 = vmatpush.msra.mxu0 0.0
    %188 = vmatpush.msra.mxu0 0.0
    %189 = vmatpush.msra.mxu0 0.0
    %190 = vmatpush.msra.mxu0 0.0
    %191 = vmatpush.msra.mxu0 0.0
    %192 = vmatpush.msra.mxu0 0.0
    %193 = vmatpush.msra.mxu0 %v174
    %194 = vmatpush.msra.mxu0 %v173
    %195 = vmatpush.msra.mxu0 %v172
    %196 = vmatpush.msra.mxu0 %v171
    %197 = vmatmul.f32.gmra.mxu0 %v179
    %v198 = vpop.f32.mrf.mxu0
    %v199 = vadd.f32 %v175, %v198
    %200 = vdwg.mxu0
    %vm201 = vcmask 516096
    %202 = vst.msk [vmem:[#allocation6] sm:$0x1] %vm201, %v199
    %vm204 = vcmask 253952
    %205 = vst.msk [vmem:[#allocation8] sm:$0x1] %vm204, %v178
    // Predicated region
    $region56: #{rnn_forward.1} parent=1 // pred_check
      _
    $region57: #{rnn_forward.1} parent=1 // pred_check_branch
      %207 = sbr.rel (0) target = $region59
    $region58: #{rnn_forward.1} parent=1 // pred_region
      %209 = vsyncadd [#allocation7], 0
      %s211 = sshll.u32 [#allocation6], 4
      %s212 = int_to_ptr.vmem [resolvable:$true] %s211
      %s213 = sshll.u32 %s8, 4
      %s214 = int_to_ptr.hbm [resolvable:$true] %s213
      %216 = dma.vmem_to_hbm [thread:$0]  %s212, 16, %s214, [#allocation7]
    $region59: #{rnn_forward.1} parent=1 // pred_fallthru
      _
    // Predicated region
    $region60: #{rnn_forward.1} parent=1 // pred_check
      _
    $region61: #{rnn_forward.1} parent=1 // pred_check_branch
      %218 = sbr.rel (0) target = $region63
    $region62: #{rnn_forward.1} parent=1 // pred_region
      %220 = vsyncadd [#allocation9], 0
      %s222 = sshll.u32 [#allocation8], 4
      %s223 = int_to_ptr.vmem [resolvable:$true] %s222
      %s224 = sshll.u32 %s9, 4
      %s225 = int_to_ptr.hbm [resolvable:$true] %s224
      %227 = dma.vmem_to_hbm [thread:$0]  %s223, 16, %s225, [#allocation9]
    $region63: #{rnn_forward.1} parent=1 // pred_fallthru
      _
    // Predicated region
    $region64: #{rnn_forward.1} parent=1 // pred_check
      _
    $region65: #{rnn_forward.1} parent=1 // pred_check_branch
      %229 = sbr.rel (0) target = $region67
    $region66: #{rnn_forward.1} parent=1 // pred_region
      %231 = dma.done [#allocation7], 16
    $region67: #{rnn_forward.1} parent=1 // pred_fallthru
      _
    // Predicated region
    $region68: #{rnn_forward.1} parent=1 // pred_check
      _
    $region69: #{rnn_forward.1} parent=1 // pred_check_branch
      %233 = sbr.rel (0) target = $region71
    $region70: #{rnn_forward.1} parent=1 // pred_region
      %235 = dma.done [#allocation9], 16
    $region71: #{rnn_forward.1} parent=1 // pred_fallthru
      _
    %236 = vsyncpa [#allocation7], 1
    %237 = vsyncpa [#allocation9], 1
  %238 = vsyncmov [#allocation3]
  %s239 = vpop.sfrf %238
  %p240 = scmp.eq.s32.totalorder %s239, 0
  %p241 = pneg %p240
  %243 = shalt.err (%p241)

</llo_original>
